<compile_context>
chip_gen: v7x
topology: tpu7x:2x2x1
jax: 0.10.0
libtpu: 0.0.40
codegen_flags: <defaults>
</compile_context>

<pallas_src>
import functools

import jax
import jax.numpy as jnp
from jax.experimental import pallas as pl
from jax.experimental.pallas import tpu as pltpu


def _channel_shuffle_kernel(x_ref, o_ref, *, groups, cpg, hw):
    # x_ref: (C, HW)            contiguous input channels, group-major
    #                           (rows [j*cpg, (j+1)*cpg) are group j)
    # o_ref: (cpg, groups*HW)   dense output slab; row g, lane block j holds
    #                           input channel j*cpg + g.
    # Flat layout of o == (N, cpg, groups, H, W) row-major, i.e. the transposed
    # result -- so the writeback is a single contiguous dense DMA.
    for j in range(groups):  # static unroll (groups == 2)
        o_ref[:, j * hw:(j + 1) * hw] = x_ref[j * cpg:(j + 1) * cpg, :]


def channel_shuffle(x, groups=2):
    """x: (N, C, H, W) with C % groups == 0.  Returns (N, C//groups, groups, H, W)."""
    N, C, H, W = x.shape
    assert C % groups == 0
    cpg = C // groups          # channels per group after the transpose (58 here)
    hw = H * W

    # Layout-preserving flatten of the spatial dims (free: minor dims merge).
    x3 = x.reshape(N, C, hw)

    out = pl.pallas_call(
        functools.partial(_channel_shuffle_kernel, groups=groups, cpg=cpg, hw=hw),
        out_shape=jax.ShapeDtypeStruct((N, cpg, groups * hw), x.dtype),
        grid=(N,),  # N == 1 -> a single grid step; whole array in one block
        in_specs=[
            # Full (C, HW) slab; last-two block dims equal the full array dims.
            pl.BlockSpec((None, C, hw), lambda n: (n, 0, 0)),
        ],
        out_specs=pl.BlockSpec((None, cpg, groups * hw), lambda n: (n, 0, 0)),
        compiler_params=pltpu.CompilerParams(
            dimension_semantics=("arbitrary",)
        ),
    )(x3)

    # Pure row-major split of the last dim: (N, cpg, groups*HW) -> (N, cpg, groups, H, W).
    return out.reshape(N, cpg, groups, H, W)


class M:
    """JAX mirror of the PyTorch module M."""

    def __call__(self, x18, x20, x24, x22, x23):
        # x20=N, x24=G, x22=H, x23=W ; view(N, 2, G, H, W) then swap dims 1,2
        return channel_shuffle(x18, groups=2)


if __name__ == "__main__":
    # Shapes taken directly from the module's constants (already small):
    #   x18: (1, 116, 28, 28), x20=1, x24=58, x22=28, x23=28
    N, C, H, W = 1, 116, 28, 28
    G = C // 2

    key = jax.random.PRNGKey(0)
    x18 = jax.random.normal(key, (N, C, H, W), dtype=jnp.float32)

    m = M()
    y = jax.block_until_ready(m(x18, N, G, H, W))

    # Reference: pure-JAX equivalent of view + transpose.
    ref = jnp.transpose(x18.reshape(N, 2, G, H, W), (0, 2, 1, 3, 4))

    assert y.shape == (N, G, 2, H, W), y.shape
    assert jnp.array_equal(y, ref), "mismatch vs reference channel shuffle"
    print("KERNEL_OK")
</pallas_src>

<mosaic_0001>
module attributes {stable_mosaic.version = 11 : i64} {
  func.func @_channel_shuffle_kernel(%arg0: i32, %arg1: memref<1x116x784xf32, #tpu.memory_space<vmem>>, %arg2: memref<1x58x1568xf32, #tpu.memory_space<vmem>>) attributes {dimension_semantics = [#tpu.dimension_semantics<arbitrary>], iteration_bounds = array<i64: 1>, scalar_prefetch = 0 : i64, scratch_operands = 0 : i64, tpu.core_type = #tpu.core_type<tc>, window_params = [{transform_indices = @transform_0, window_bounds = array<i64: 1, 116, 784>}, {transform_indices = @transform_1, window_bounds = array<i64: 1, 58, 1568>}]} {
    %c0 = arith.constant 0 : index
    %c0_0 = arith.constant 0 : index
    %c0_1 = arith.constant 0 : index
    %0 = vector.load %arg1[%c0, %c0_0, %c0_1] : memref<1x116x784xf32, #tpu.memory_space<vmem>>, vector<1x58x784xf32>
    %1 = vector.shape_cast %0 : vector<1x58x784xf32> to vector<58x784xf32>
    %c0_2 = arith.constant 0 : index
    %c0_3 = arith.constant 0 : index
    %c0_4 = arith.constant 0 : index
    %2 = vector.load %arg2[%c0_2, %c0_3, %c0_4] : memref<1x58x1568xf32, #tpu.memory_space<vmem>>, vector<1x58x784xf32>
    %3 = vector.shape_cast %2 : vector<1x58x784xf32> to vector<58x784xf32>
    %4 = vector.shape_cast %1 : vector<58x784xf32> to vector<1x58x784xf32>
    tpu.vector_store %arg2[%c0_2, %c0_3, %c0_4], %4 {strides = array<i32>} : memref<1x58x1568xf32, #tpu.memory_space<vmem>>, vector<1x58x784xf32>,
    %c0_5 = arith.constant 0 : index
    %c58 = arith.constant 58 : index
    %c0_6 = arith.constant 0 : index
    %5 = vector.load %arg1[%c0_5, %c58, %c0_6] : memref<1x116x784xf32, #tpu.memory_space<vmem>>, vector<1x58x784xf32>
    %6 = vector.shape_cast %5 : vector<1x58x784xf32> to vector<58x784xf32>
    %c0_7 = arith.constant 0 : index
    %c0_8 = arith.constant 0 : index
    %c784 = arith.constant 784 : index
    %7 = vector.load %arg2[%c0_7, %c0_8, %c784] : memref<1x58x1568xf32, #tpu.memory_space<vmem>>, vector<1x58x784xf32>
    %8 = vector.shape_cast %7 : vector<1x58x784xf32> to vector<58x784xf32>
    %9 = vector.shape_cast %6 : vector<58x784xf32> to vector<1x58x784xf32>
    tpu.vector_store %arg2[%c0_7, %c0_8, %c784], %9 {strides = array<i32>} : memref<1x58x1568xf32, #tpu.memory_space<vmem>>, vector<1x58x784xf32>,
    return
  }
  func.func @transform_0(%arg0: i32) -> (i32, i32, i32) {
    %c0_i32 = arith.constant 0 : i32
    %c0_i32_0 = arith.constant 0 : i32
    %c0_i32_1 = arith.constant 0 : i32
    return %arg0, %c0_i32, %c0_i32_0 : i32, i32, i32
  }
  func.func @transform_1(%arg0: i32) -> (i32, i32, i32) {
    %c0_i32 = arith.constant 0 : i32
    %c0_i32_0 = arith.constant 0 : i32
    %c0_i32_1 = arith.constant 0 : i32
    return %arg0, %c0_i32, %c0_i32_0 : i32, i32, i32
  }
}

</mosaic_0001>

<llo_original>
// kernel: tpu_custom_call.1
$region0: #{tpu_custom_call.1}
  #allocation0 [shape = 'u32[]', space=smem, size = 0x4, offset = 0x4, fixed_abs, tag = 'smem constant byte address 0x4 - core index']
  #allocation1 [shape = 'u32[144,128]{1,0:T(1,128)}', space=vmem, size = 0x12000, scoped, tag = 'internal scratch']
  %s0 = inlined_call_operand.vmem [shape: f32[1,116,784], index: 0, kind: input, shape index: {}]
  %s1 = inlined_call_operand.vmem [shape: f32[1,58,1568], index: 1, kind: output, shape index: {}]
  %s2 = sld [smem:[#allocation0]]
  $region14: #{tpu_custom_call.1} parent=0
    _
  %s4 = ssub.s32 1, %s2
  %s5 = scalar_select 0, %s4, %s2
  // Predicated region
  $region2: #{tpu_custom_call.1} parent=0 // pred_check
    _
  $region3: #{tpu_custom_call.1} parent=0 // pred_check_branch
    %7 = sbr.rel (0) target = $region5
  $region4: #{tpu_custom_call.1} parent=0 // pred_region
    _
  $region5: #{tpu_custom_call.1} parent=0 // pred_fallthru
    _
  %v8 = vld [vmem:[%s0] sm:$0xff]
  %v9 = vld [vmem:[%s0 + $0x8] sm:$0xff]
  %v10 = vld [vmem:[%s0 + $0x10] sm:$0xff]
  %v11 = vld [vmem:[%s0 + $0x18] sm:$0xff]
  %v12 = vld [vmem:[%s0 + $0x20] sm:$0xff]
  %v13 = vld [vmem:[%s0 + $0x28] sm:$0xff]
  %v14 = vld [vmem:[%s0 + $0x30] sm:$0xff]
  %v15 = vld [vmem:[%s0 + $0x38] sm:$0xff]
  %v16 = vld [vmem:[%s0 + $0x40] sm:$0xff]
  %v17 = vld [vmem:[%s0 + $0x48] sm:$0xff]
  %v18 = vld [vmem:[%s0 + $0x50] sm:$0xff]
  %v19 = vld [vmem:[%s0 + $0x58] sm:$0xff]
  %v20 = vld [vmem:[%s0 + $0x60] sm:$0xff]
  %v21 = vld [vmem:[%s0 + $0x68] sm:$0xff]
  %v22 = vld [vmem:[%s0 + $0x70] sm:$0xff]
  %v23 = vld [vmem:[%s0 + $0x78] sm:$0xff]
  %v24 = vld [vmem:[%s0 + $0x80] sm:$0xff]
  %v25 = vld [vmem:[%s0 + $0x88] sm:$0xff]
  %v26 = vld [vmem:[%s0 + $0x90] sm:$0xff]
  %v27 = vld [vmem:[%s0 + $0x98] sm:$0xff]
  %v28 = vld [vmem:[%s0 + $0xa0] sm:$0xff]
  %v29 = vld [vmem:[%s0 + $0xa8] sm:$0xff]
  %v30 = vld [vmem:[%s0 + $0xb0] sm:$0xff]
  %v31 = vld [vmem:[%s0 + $0xb8] sm:$0xff]
  %v32 = vld [vmem:[%s0 + $0xc0] sm:$0xff]
  %v33 = vld [vmem:[%s0 + $0xc8] sm:$0xff]
  %v34 = vld [vmem:[%s0 + $0xd0] sm:$0xff]
  %v35 = vld [vmem:[%s0 + $0xd8] sm:$0xff]
  %v36 = vld [vmem:[%s0 + $0xe0] sm:$0xff]
  %v37 = vld [vmem:[%s0 + $0xe8] sm:$0xff]
  %v38 = vld [vmem:[%s0 + $0xf0] sm:$0xff]
  %v39 = vld [vmem:[%s0 + $0xf8] sm:$0xff]
  %v40 = vld [vmem:[%s0 + $0x100] sm:$0xff]
  %v41 = vld [vmem:[%s0 + $0x108] sm:$0xff]
  %v42 = vld [vmem:[%s0 + $0x110] sm:$0xff]
  %v43 = vld [vmem:[%s0 + $0x118] sm:$0xff]
  %v44 = vld [vmem:[%s0 + $0x120] sm:$0xff]
  %v45 = vld [vmem:[%s0 + $0x128] sm:$0xff]
  %v46 = vld [vmem:[%s0 + $0x130] sm:$0xff]
  %v47 = vld [vmem:[%s0 + $0x138] sm:$0xff]
  %v48 = vld [vmem:[%s0 + $0x140] sm:$0xff]
  %v49 = vld [vmem:[%s0 + $0x148] sm:$0xff]
  %v50 = vld [vmem:[%s0 + $0x150] sm:$0xff]
  %v51 = vld [vmem:[%s0 + $0x158] sm:$0xff]
  %v52 = vld [vmem:[%s0 + $0x160] sm:$0xff]
  %v53 = vld [vmem:[%s0 + $0x168] sm:$0xff]
  %v54 = vld [vmem:[%s0 + $0x170] sm:$0xff]
  %v55 = vld [vmem:[%s0 + $0x178] sm:$0xff]
  %v56 = vld [vmem:[%s0 + $0x180] sm:$0xff]
  %v57 = vld [vmem:[%s0 + $0x188] sm:$0x3]
  %v58 = vld [vmem:[%s0 + $0x190] sm:$0x3]
  %v59 = vld [vmem:[%s0 + $0x198] sm:$0x3]
  %v60 = vld [vmem:[%s0 + $0x1a0] sm:$0x3]
  %v61 = vld [vmem:[%s0 + $0x1a8] sm:$0x3]
  %v62 = vld [vmem:[%s0 + $0x1b0] sm:$0x3]
  %v63 = vld [vmem:[%s0 + $0x1b8] sm:$0x3]
  %64 = vst [vmem:[%s1] sm:$0xff] %v8
  %65 = vst [vmem:[%s1 + $0x8] sm:$0xff] %v9
  %66 = vst [vmem:[%s1 + $0x10] sm:$0xff] %v10
  %67 = vst [vmem:[%s1 + $0x18] sm:$0xff] %v11
  %68 = vst [vmem:[%s1 + $0x20] sm:$0xff] %v12
  %69 = vst [vmem:[%s1 + $0x28] sm:$0xff] %v13
  %vm70 = vcmask 130048
  %71 = vst.msk [vmem:[%s1 + $0x30] sm:$0xff] %vm70, %v14
  %72 = vst [vmem:[%s1 + $0x68] sm:$0xff] %v15
  %73 = vst [vmem:[%s1 + $0x70] sm:$0xff] %v16
  %74 = vst [vmem:[%s1 + $0x78] sm:$0xff] %v17
  %75 = vst [vmem:[%s1 + $0x80] sm:$0xff] %v18
  %76 = vst [vmem:[%s1 + $0x88] sm:$0xff] %v19
  %77 = vst [vmem:[%s1 + $0x90] sm:$0xff] %v20
  %78 = vst.msk [vmem:[%s1 + $0x98] sm:$0xff] %vm70, %v21
  %79 = vst [vmem:[%s1 + $0xd0] sm:$0xff] %v22
  %80 = vst [vmem:[%s1 + $0xd8] sm:$0xff] %v23
  %81 = vst [vmem:[%s1 + $0xe0] sm:$0xff] %v24
  %82 = vst [vmem:[%s1 + $0xe8] sm:$0xff] %v25
  %83 = vst [vmem:[%s1 + $0xf0] sm:$0xff] %v26
  %84 = vst [vmem:[%s1 + $0xf8] sm:$0xff] %v27
  %85 = vst.msk [vmem:[%s1 + $0x100] sm:$0xff] %vm70, %v28
  %86 = vst [vmem:[%s1 + $0x138] sm:$0xff] %v29
  %87 = vst [vmem:[%s1 + $0x140] sm:$0xff] %v30
  %88 = vst [vmem:[%s1 + $0x148] sm:$0xff] %v31
  %89 = vst [vmem:[%s1 + $0x150] sm:$0xff] %v32
  %90 = vst [vmem:[%s1 + $0x158] sm:$0xff] %v33
  %91 = vst [vmem:[%s1 + $0x160] sm:$0xff] %v34
  %92 = vst.msk [vmem:[%s1 + $0x168] sm:$0xff] %vm70, %v35
  %93 = vst [vmem:[%s1 + $0x1a0] sm:$0xff] %v36
  %94 = vst [vmem:[%s1 + $0x1a8] sm:$0xff] %v37
  %95 = vst [vmem:[%s1 + $0x1b0] sm:$0xff] %v38
  %96 = vst [vmem:[%s1 + $0x1b8] sm:$0xff] %v39
  %97 = vst [vmem:[%s1 + $0x1c0] sm:$0xff] %v40
  %98 = vst [vmem:[%s1 + $0x1c8] sm:$0xff] %v41
  %99 = vst.msk [vmem:[%s1 + $0x1d0] sm:$0xff] %vm70, %v42
  %100 = vst [vmem:[%s1 + $0x208] sm:$0xff] %v43
  %101 = vst [vmem:[%s1 + $0x210] sm:$0xff] %v44
  %102 = vst [vmem:[%s1 + $0x218] sm:$0xff] %v45
  %103 = vst [vmem:[%s1 + $0x220] sm:$0xff] %v46
  %104 = vst [vmem:[%s1 + $0x228] sm:$0xff] %v47
  %105 = vst [vmem:[%s1 + $0x230] sm:$0xff] %v48
  %106 = vst.msk [vmem:[%s1 + $0x238] sm:$0xff] %vm70, %v49
  %107 = vst [vmem:[%s1 + $0x270] sm:$0xff] %v50
  %108 = vst [vmem:[%s1 + $0x278] sm:$0xff] %v51
  %109 = vst [vmem:[%s1 + $0x280] sm:$0xff] %v52
  %110 = vst [vmem:[%s1 + $0x288] sm:$0xff] %v53
  %111 = vst [vmem:[%s1 + $0x290] sm:$0xff] %v54
  %112 = vst [vmem:[%s1 + $0x298] sm:$0xff] %v55
  %113 = vst.msk [vmem:[%s1 + $0x2a0] sm:$0xff] %vm70, %v56
  %114 = vst [vmem:[%s1 + $0x2d8] sm:$0x3] %v57
  %115 = vst [vmem:[%s1 + $0x2e0] sm:$0x3] %v58
  %116 = vst [vmem:[%s1 + $0x2e8] sm:$0x3] %v59
  %117 = vst [vmem:[%s1 + $0x2f0] sm:$0x3] %v60
  %118 = vst [vmem:[%s1 + $0x2f8] sm:$0x3] %v61
  %119 = vst [vmem:[%s1 + $0x300] sm:$0x3] %v62
  %vm120 = vcmask 123904
  %121 = vst.msk [vmem:[%s1 + $0x308] sm:$0x3] %vm120, %v63
  %v122 = vld [vmem:[%s0 + $0x188] sm:$0xfc]
  %v123 = vld [vmem:[%s0 + $0x190] sm:$0xfc]
  %v124 = vld [vmem:[%s0 + $0x198] sm:$0xfc]
  %v125 = vld [vmem:[%s0 + $0x1a0] sm:$0xfc]
  %v126 = vld [vmem:[%s0 + $0x1a8] sm:$0xfc]
  %v127 = vld [vmem:[%s0 + $0x1b0] sm:$0xfc]
  %v128 = vld [vmem:[%s0 + $0x1b8] sm:$0xfc]
  %v129 = vld [vmem:[%s0 + $0x1c0] sm:$0xff]
  %v130 = vld [vmem:[%s0 + $0x1c8] sm:$0xff]
  %v131 = vld [vmem:[%s0 + $0x1d0] sm:$0xff]
  %v132 = vld [vmem:[%s0 + $0x1d8] sm:$0xff]
  %v133 = vld [vmem:[%s0 + $0x1e0] sm:$0xff]
  %v134 = vld [vmem:[%s0 + $0x1e8] sm:$0xff]
  %v135 = vld [vmem:[%s0 + $0x1f0] sm:$0xff]
  %v136 = vld [vmem:[%s0 + $0x1f8] sm:$0xff]
  %v137 = vld [vmem:[%s0 + $0x200] sm:$0xff]
  %v138 = vld [vmem:[%s0 + $0x208] sm:$0xff]
  %v139 = vld [vmem:[%s0 + $0x210] sm:$0xff]
  %v140 = vld [vmem:[%s0 + $0x218] sm:$0xff]
  %v141 = vld [vmem:[%s0 + $0x220] sm:$0xff]
  %v142 = vld [vmem:[%s0 + $0x228] sm:$0xff]
  %v143 = vld [vmem:[%s0 + $0x230] sm:$0xff]
  %v144 = vld [vmem:[%s0 + $0x238] sm:$0xff]
  %v145 = vld [vmem:[%s0 + $0x240] sm:$0xff]
  %v146 = vld [vmem:[%s0 + $0x248] sm:$0xff]
  %v147 = vld [vmem:[%s0 + $0x250] sm:$0xff]
  %v148 = vld [vmem:[%s0 + $0x258] sm:$0xff]
  %v149 = vld [vmem:[%s0 + $0x260] sm:$0xff]
  %v150 = vld [vmem:[%s0 + $0x268] sm:$0xff]
  %v151 = vld [vmem:[%s0 + $0x270] sm:$0xff]
  %v152 = vld [vmem:[%s0 + $0x278] sm:$0xff]
  %v153 = vld [vmem:[%s0 + $0x280] sm:$0xff]
  %v154 = vld [vmem:[%s0 + $0x288] sm:$0xff]
  %v155 = vld [vmem:[%s0 + $0x290] sm:$0xff]
  %v156 = vld [vmem:[%s0 + $0x298] sm:$0xff]
  %v157 = vld [vmem:[%s0 + $0x2a0] sm:$0xff]
  %v158 = vld [vmem:[%s0 + $0x2a8] sm:$0xff]
  %v159 = vld [vmem:[%s0 + $0x2b0] sm:$0xff]
  %v160 = vld [vmem:[%s0 + $0x2b8] sm:$0xff]
  %v161 = vld [vmem:[%s0 + $0x2c0] sm:$0xff]
  %v162 = vld [vmem:[%s0 + $0x2c8] sm:$0xff]
  %v163 = vld [vmem:[%s0 + $0x2d0] sm:$0xff]
  %v164 = vld [vmem:[%s0 + $0x2d8] sm:$0xff]
  %v165 = vld [vmem:[%s0 + $0x2e0] sm:$0xff]
  %v166 = vld [vmem:[%s0 + $0x2e8] sm:$0xff]
  %v167 = vld [vmem:[%s0 + $0x2f0] sm:$0xff]
  %v168 = vld [vmem:[%s0 + $0x2f8] sm:$0xff]
  %v169 = vld [vmem:[%s0 + $0x300] sm:$0xff]
  %v170 = vld [vmem:[%s0 + $0x308] sm:$0xff]
  %v171 = vld [vmem:[%s0 + $0x310] sm:$0xf]
  %v172 = vld [vmem:[%s0 + $0x318] sm:$0xf]
  %v173 = vld [vmem:[%s0 + $0x320] sm:$0xf]
  %v174 = vld [vmem:[%s0 + $0x328] sm:$0xf]
  %v175 = vld [vmem:[%s0 + $0x330] sm:$0xf]
  %v176 = vld [vmem:[%s0 + $0x338] sm:$0xf]
  %v177 = vld [vmem:[%s0 + $0x340] sm:$0xf]
  %vm234 = vcmask 1045504
  %v235 = vrot.slane %v122, 2
  %v236 = vrot.slane %v129, 2
  %v237 = vsel %vm234, %v235, %v236
  %v238 = vrot.slane %v123, 2
  %v239 = vrot.slane %v130, 2
  %v240 = vsel %vm234, %v238, %v239
  %v241 = vrot.slane %v124, 2
  %v242 = vrot.slane %v131, 2
  %v243 = vsel %vm234, %v241, %v242
  %v244 = vrot.slane %v125, 2
  %v245 = vrot.slane %v132, 2
  %v246 = vsel %vm234, %v244, %v245
  %v247 = vrot.slane %v126, 2
  %v248 = vrot.slane %v133, 2
  %v249 = vsel %vm234, %v247, %v248
  %v250 = vrot.slane %v127, 2
  %v251 = vrot.slane %v134, 2
  %v252 = vsel %vm234, %v250, %v251
  %v253 = vrot.slane %v128, 2
  %v254 = vrot.slane %v135, 2
  %v255 = vsel %vm234, %v253, %v254
  %v256 = vrot.slane %v136, 2
  %v257 = vsel %vm234, %v236, %v256
  %v258 = vrot.slane %v137, 2
  %v259 = vsel %vm234, %v239, %v258
  %v260 = vrot.slane %v138, 2
  %v261 = vsel %vm234, %v242, %v260
  %v262 = vrot.slane %v139, 2
  %v263 = vsel %vm234, %v245, %v262
  %v264 = vrot.slane %v140, 2
  %v265 = vsel %vm234, %v248, %v264
  %v266 = vrot.slane %v141, 2
  %v267 = vsel %vm234, %v251, %v266
  %v268 = vrot.slane %v142, 2
  %v269 = vsel %vm234, %v254, %v268
  %v270 = vrot.slane %v143, 2
  %v271 = vsel %vm234, %v256, %v270
  %v272 = vrot.slane %v144, 2
  %v273 = vsel %vm234, %v258, %v272
  %v274 = vrot.slane %v145, 2
  %v275 = vsel %vm234, %v260, %v274
  %v276 = vrot.slane %v146, 2
  %v277 = vsel %vm234, %v262, %v276
  %v278 = vrot.slane %v147, 2
  %v279 = vsel %vm234, %v264, %v278
  %v280 = vrot.slane %v148, 2
  %v281 = vsel %vm234, %v266, %v280
  %v282 = vrot.slane %v149, 2
  %v283 = vsel %vm234, %v268, %v282
  %v284 = vrot.slane %v150, 2
  %v285 = vsel %vm234, %v270, %v284
  %v286 = vrot.slane %v151, 2
  %v287 = vsel %vm234, %v272, %v286
  %v288 = vrot.slane %v152, 2
  %v289 = vsel %vm234, %v274, %v288
  %v290 = vrot.slane %v153, 2
  %v291 = vsel %vm234, %v276, %v290
  %v292 = vrot.slane %v154, 2
  %v293 = vsel %vm234, %v278, %v292
  %v294 = vrot.slane %v155, 2
  %v295 = vsel %vm234, %v280, %v294
  %v296 = vrot.slane %v156, 2
  %v297 = vsel %vm234, %v282, %v296
  %v298 = vrot.slane %v157, 2
  %v299 = vsel %vm234, %v284, %v298
  %v300 = vrot.slane %v158, 2
  %v301 = vsel %vm234, %v286, %v300
  %v302 = vrot.slane %v159, 2
  %v303 = vsel %vm234, %v288, %v302
  %v304 = vrot.slane %v160, 2
  %v305 = vsel %vm234, %v290, %v304
  %v306 = vrot.slane %v161, 2
  %v307 = vsel %vm234, %v292, %v306
  %v308 = vrot.slane %v162, 2
  %v309 = vsel %vm234, %v294, %v308
  %v310 = vrot.slane %v163, 2
  %v311 = vsel %vm234, %v296, %v310
  %v312 = vrot.slane %v164, 2
  %v313 = vsel %vm234, %v298, %v312
  %v314 = vrot.slane %v165, 2
  %v315 = vsel %vm234, %v300, %v314
  %v316 = vrot.slane %v166, 2
  %v317 = vsel %vm234, %v302, %v316
  %v318 = vrot.slane %v167, 2
  %v319 = vsel %vm234, %v304, %v318
  %v320 = vrot.slane %v168, 2
  %v321 = vsel %vm234, %v306, %v320
  %v322 = vrot.slane %v169, 2
  %v323 = vsel %vm234, %v308, %v322
  %v324 = vrot.slane %v170, 2
  %v325 = vsel %vm234, %v310, %v324
  %v326 = vrot.slane %v171, 2
  %v327 = vsel %vm234, %v312, %v326
  %v328 = vrot.slane %v172, 2
  %v329 = vsel %vm234, %v314, %v328
  %v330 = vrot.slane %v173, 2
  %v331 = vsel %vm234, %v316, %v330
  %v332 = vrot.slane %v174, 2
  %v333 = vsel %vm234, %v318, %v332
  %v334 = vrot.slane %v175, 2
  %v335 = vsel %vm234, %v320, %v334
  %v336 = vrot.slane %v176, 2
  %v337 = vsel %vm234, %v322, %v336
  %v338 = vrot.slane %v177, 2
  %v339 = vsel %vm234, %v324, %v338
  %340 = vrot.lane.b32.xlu0 %v237, 16
  %v341 = vpop.permute.xlu0 %340
  %342 = vrot.lane.b32.xlu0 %v240, 16
  %v343 = vpop.permute.xlu0 %342
  %344 = vrot.lane.b32.xlu0 %v243, 16
  %v345 = vpop.permute.xlu0 %344
  %346 = vrot.lane.b32.xlu0 %v246, 16
  %v347 = vpop.permute.xlu0 %346
  %348 = vrot.lane.b32.xlu0 %v249, 16
  %v349 = vpop.permute.xlu0 %348
  %350 = vrot.lane.b32.xlu0 %v252, 16
  %v351 = vpop.permute.xlu0 %350
  %352 = vrot.lane.b32.xlu0 %v255, 16
  %v353 = vpop.permute.xlu0 %352
  %354 = vrot.lane.b32.xlu0 %v257, 16
  %v355 = vpop.permute.xlu0 %354
  %356 = vrot.lane.b32.xlu0 %v259, 16
  %v357 = vpop.permute.xlu0 %356
  %358 = vrot.lane.b32.xlu0 %v261, 16
  %v359 = vpop.permute.xlu0 %358
  %360 = vrot.lane.b32.xlu0 %v263, 16
  %v361 = vpop.permute.xlu0 %360
  %362 = vrot.lane.b32.xlu0 %v265, 16
  %v363 = vpop.permute.xlu0 %362
  %364 = vrot.lane.b32.xlu0 %v267, 16
  %v365 = vpop.permute.xlu0 %364
  %366 = vrot.lane.b32.xlu0 %v269, 16
  %v367 = vpop.permute.xlu0 %366
  %368 = vrot.lane.b32.xlu0 %v271, 16
  %v369 = vpop.permute.xlu0 %368
  %370 = vrot.lane.b32.xlu0 %v273, 16
  %v371 = vpop.permute.xlu0 %370
  %372 = vrot.lane.b32.xlu0 %v275, 16
  %v373 = vpop.permute.xlu0 %372
  %374 = vrot.lane.b32.xlu0 %v277, 16
  %v375 = vpop.permute.xlu0 %374
  %376 = vrot.lane.b32.xlu0 %v279, 16
  %v377 = vpop.permute.xlu0 %376
  %378 = vrot.lane.b32.xlu0 %v281, 16
  %v379 = vpop.permute.xlu0 %378
  %380 = vrot.lane.b32.xlu0 %v283, 16
  %v381 = vpop.permute.xlu0 %380
  %382 = vrot.lane.b32.xlu0 %v285, 16
  %v383 = vpop.permute.xlu0 %382
  %384 = vrot.lane.b32.xlu0 %v287, 16
  %v385 = vpop.permute.xlu0 %384
  %386 = vrot.lane.b32.xlu0 %v289, 16
  %v387 = vpop.permute.xlu0 %386
  %388 = vrot.lane.b32.xlu0 %v291, 16
  %v389 = vpop.permute.xlu0 %388
  %390 = vrot.lane.b32.xlu0 %v293, 16
  %v391 = vpop.permute.xlu0 %390
  %392 = vrot.lane.b32.xlu0 %v295, 16
  %v393 = vpop.permute.xlu0 %392
  %394 = vrot.lane.b32.xlu0 %v297, 16
  %v395 = vpop.permute.xlu0 %394
  %396 = vrot.lane.b32.xlu0 %v299, 16
  %v397 = vpop.permute.xlu0 %396
  %398 = vrot.lane.b32.xlu0 %v301, 16
  %v399 = vpop.permute.xlu0 %398
  %400 = vrot.lane.b32.xlu0 %v303, 16
  %v401 = vpop.permute.xlu0 %400
  %402 = vrot.lane.b32.xlu0 %v305, 16
  %v403 = vpop.permute.xlu0 %402
  %404 = vrot.lane.b32.xlu0 %v307, 16
  %v405 = vpop.permute.xlu0 %404
  %406 = vrot.lane.b32.xlu0 %v309, 16
  %v407 = vpop.permute.xlu0 %406
  %408 = vrot.lane.b32.xlu0 %v311, 16
  %v409 = vpop.permute.xlu0 %408
  %410 = vrot.lane.b32.xlu0 %v313, 16
  %v411 = vpop.permute.xlu0 %410
  %412 = vrot.lane.b32.xlu0 %v315, 16
  %v413 = vpop.permute.xlu0 %412
  %414 = vrot.lane.b32.xlu0 %v317, 16
  %v415 = vpop.permute.xlu0 %414
  %416 = vrot.lane.b32.xlu0 %v319, 16
  %v417 = vpop.permute.xlu0 %416
  %418 = vrot.lane.b32.xlu0 %v321, 16
  %v419 = vpop.permute.xlu0 %418
  %420 = vrot.lane.b32.xlu0 %v323, 16
  %v421 = vpop.permute.xlu0 %420
  %422 = vrot.lane.b32.xlu0 %v325, 16
  %v423 = vpop.permute.xlu0 %422
  %424 = vrot.lane.b32.xlu0 %v327, 16
  %v425 = vpop.permute.xlu0 %424
  %426 = vrot.lane.b32.xlu0 %v329, 16
  %v427 = vpop.permute.xlu0 %426
  %428 = vrot.lane.b32.xlu0 %v331, 16
  %v429 = vpop.permute.xlu0 %428
  %430 = vrot.lane.b32.xlu0 %v333, 16
  %v431 = vpop.permute.xlu0 %430
  %432 = vrot.lane.b32.xlu0 %v335, 16
  %v433 = vpop.permute.xlu0 %432
  %434 = vrot.lane.b32.xlu0 %v337, 16
  %v435 = vpop.permute.xlu0 %434
  %436 = vrot.lane.b32.xlu0 %v339, 16
  %v437 = vpop.permute.xlu0 %436
  %438 = vrot.lane.b32.xlu0 %v326, 16
  %v439 = vpop.permute.xlu0 %438
  %440 = vrot.lane.b32.xlu0 %v328, 16
  %v441 = vpop.permute.xlu0 %440
  %442 = vrot.lane.b32.xlu0 %v330, 16
  %v443 = vpop.permute.xlu0 %442
  %444 = vrot.lane.b32.xlu0 %v332, 16
  %v445 = vpop.permute.xlu0 %444
  %446 = vrot.lane.b32.xlu0 %v334, 16
  %v447 = vpop.permute.xlu0 %446
  %448 = vrot.lane.b32.xlu0 %v336, 16
  %v449 = vpop.permute.xlu0 %448
  %450 = vrot.lane.b32.xlu0 %v338, 16
  %v451 = vpop.permute.xlu0 %450
  %v452 = vsel %vm70, %v341, %v343
  %v453 = vsel %vm70, %v343, %v345
  %v454 = vsel %vm70, %v345, %v347
  %v455 = vsel %vm70, %v347, %v349
  %v456 = vsel %vm70, %v349, %v351
  %v457 = vsel %vm70, %v351, %v353
  %v458 = vsel %vm70, %v355, %v357
  %v459 = vsel %vm70, %v357, %v359
  %v460 = vsel %vm70, %v359, %v361
  %v461 = vsel %vm70, %v361, %v363
  %v462 = vsel %vm70, %v363, %v365
  %v463 = vsel %vm70, %v365, %v367
  %v464 = vsel %vm70, %v369, %v371
  %v465 = vsel %vm70, %v371, %v373
  %v466 = vsel %vm70, %v373, %v375
  %v467 = vsel %vm70, %v375, %v377
  %v468 = vsel %vm70, %v377, %v379
  %v469 = vsel %vm70, %v379, %v381
  %v470 = vsel %vm70, %v383, %v385
  %v471 = vsel %vm70, %v385, %v387
  %v472 = vsel %vm70, %v387, %v389
  %v473 = vsel %vm70, %v389, %v391
  %v474 = vsel %vm70, %v391, %v393
  %v475 = vsel %vm70, %v393, %v395
  %v476 = vsel %vm70, %v397, %v399
  %v477 = vsel %vm70, %v399, %v401
  %v478 = vsel %vm70, %v401, %v403
  %v479 = vsel %vm70, %v403, %v405
  %v480 = vsel %vm70, %v405, %v407
  %v481 = vsel %vm70, %v407, %v409
  %v482 = vsel %vm70, %v411, %v413
  %v483 = vsel %vm70, %v413, %v415
  %v484 = vsel %vm70, %v415, %v417
  %v485 = vsel %vm70, %v417, %v419
  %v486 = vsel %vm70, %v419, %v421
  %v487 = vsel %vm70, %v421, %v423
  %v488 = vsel %vm70, %v425, %v427
  %v489 = vsel %vm70, %v427, %v429
  %v490 = vsel %vm70, %v429, %v431
  %v491 = vsel %vm70, %v431, %v433
  %v492 = vsel %vm70, %v433, %v435
  %v493 = vsel %vm70, %v435, %v437
  %v494 = vsel %vm70, %v439, %v441
  %v495 = vsel %vm70, %v441, %v443
  %v496 = vsel %vm70, %v443, %v445
  %v497 = vsel %vm70, %v445, %v447
  %v498 = vsel %vm70, %v447, %v449
  %v499 = vsel %vm70, %v449, %v451
  %vm556 = vcmask 1047680
  %557 = vst.msk [vmem:[%s1 + $0x30] sm:$0xff] %vm556, %v341
  %558 = vst [vmem:[%s1 + $0x38] sm:$0xff] %v452
  %559 = vst [vmem:[%s1 + $0x40] sm:$0xff] %v453
  %560 = vst [vmem:[%s1 + $0x48] sm:$0xff] %v454
  %561 = vst [vmem:[%s1 + $0x50] sm:$0xff] %v455
  %562 = vst [vmem:[%s1 + $0x58] sm:$0xff] %v456
  %vm563 = vcmask 261120
  %564 = vst.msk [vmem:[%s1 + $0x60] sm:$0xff] %vm563, %v457
  %565 = vst.msk [vmem:[%s1 + $0x98] sm:$0xff] %vm556, %v355
  %566 = vst [vmem:[%s1 + $0xa0] sm:$0xff] %v458
  %567 = vst [vmem:[%s1 + $0xa8] sm:$0xff] %v459
  %568 = vst [vmem:[%s1 + $0xb0] sm:$0xff] %v460
  %569 = vst [vmem:[%s1 + $0xb8] sm:$0xff] %v461
  %570 = vst [vmem:[%s1 + $0xc0] sm:$0xff] %v462
  %571 = vst.msk [vmem:[%s1 + $0xc8] sm:$0xff] %vm563, %v463
  %572 = vst.msk [vmem:[%s1 + $0x100] sm:$0xff] %vm556, %v369
  %573 = vst [vmem:[%s1 + $0x108] sm:$0xff] %v464
  %574 = vst [vmem:[%s1 + $0x110] sm:$0xff] %v465
  %575 = vst [vmem:[%s1 + $0x118] sm:$0xff] %v466
  %576 = vst [vmem:[%s1 + $0x120] sm:$0xff] %v467
  %577 = vst [vmem:[%s1 + $0x128] sm:$0xff] %v468
  %578 = vst.msk [vmem:[%s1 + $0x130] sm:$0xff] %vm563, %v469
  %579 = vst.msk [vmem:[%s1 + $0x168] sm:$0xff] %vm556, %v383
  %580 = vst [vmem:[%s1 + $0x170] sm:$0xff] %v470
  %581 = vst [vmem:[%s1 + $0x178] sm:$0xff] %v471
  %582 = vst [vmem:[%s1 + $0x180] sm:$0xff] %v472
  %583 = vst [vmem:[%s1 + $0x188] sm:$0xff] %v473
  %584 = vst [vmem:[%s1 + $0x190] sm:$0xff] %v474
  %585 = vst.msk [vmem:[%s1 + $0x198] sm:$0xff] %vm563, %v475
  %586 = vst.msk [vmem:[%s1 + $0x1d0] sm:$0xff] %vm556, %v397
  %587 = vst [vmem:[%s1 + $0x1d8] sm:$0xff] %v476
  %588 = vst [vmem:[%s1 + $0x1e0] sm:$0xff] %v477
  %589 = vst [vmem:[%s1 + $0x1e8] sm:$0xff] %v478
  %590 = vst [vmem:[%s1 + $0x1f0] sm:$0xff] %v479
  %591 = vst [vmem:[%s1 + $0x1f8] sm:$0xff] %v480
  %592 = vst.msk [vmem:[%s1 + $0x200] sm:$0xff] %vm563, %v481
  %593 = vst.msk [vmem:[%s1 + $0x238] sm:$0xff] %vm556, %v411
  %594 = vst [vmem:[%s1 + $0x240] sm:$0xff] %v482
  %595 = vst [vmem:[%s1 + $0x248] sm:$0xff] %v483
  %596 = vst [vmem:[%s1 + $0x250] sm:$0xff] %v484
  %597 = vst [vmem:[%s1 + $0x258] sm:$0xff] %v485
  %598 = vst [vmem:[%s1 + $0x260] sm:$0xff] %v486
  %599 = vst.msk [vmem:[%s1 + $0x268] sm:$0xff] %vm563, %v487
  %600 = vst.msk [vmem:[%s1 + $0x2a0] sm:$0xff] %vm556, %v425
  %601 = vst [vmem:[%s1 + $0x2a8] sm:$0xff] %v488
  %602 = vst [vmem:[%s1 + $0x2b0] sm:$0xff] %v489
  %603 = vst [vmem:[%s1 + $0x2b8] sm:$0xff] %v490
  %604 = vst [vmem:[%s1 + $0x2c0] sm:$0xff] %v491
  %605 = vst [vmem:[%s1 + $0x2c8] sm:$0xff] %v492
  %606 = vst.msk [vmem:[%s1 + $0x2d0] sm:$0xff] %vm563, %v493
  %vm607 = vcmask 1041536
  %608 = vst.msk [vmem:[%s1 + $0x308] sm:$0x3] %vm607, %v439
  %609 = vst [vmem:[%s1 + $0x310] sm:$0x3] %v494
  %610 = vst [vmem:[%s1 + $0x318] sm:$0x3] %v495
  %611 = vst [vmem:[%s1 + $0x320] sm:$0x3] %v496
  %612 = vst [vmem:[%s1 + $0x328] sm:$0x3] %v497
  %613 = vst [vmem:[%s1 + $0x330] sm:$0x3] %v498
  %vm614 = vcmask 254976
  %615 = vst.msk [vmem:[%s1 + $0x338] sm:$0x3] %vm614, %v499
  // Predicated region
  $region6: #{tpu_custom_call.1} parent=0 // pred_check
    _
  $region7: #{tpu_custom_call.1} parent=0 // pred_check_branch
    %617 = sbr.rel (0) target = $region9
  $region8: #{tpu_custom_call.1} parent=0 // pred_region
    _
  $region9: #{tpu_custom_call.1} parent=0 // pred_fallthru
    _
  // Predicated region
  $region10: #{tpu_custom_call.1} parent=0 // pred_check
    _
  $region11: #{tpu_custom_call.1} parent=0 // pred_check_branch
    %619 = sbr.rel (0) target = $region13
  $region12: #{tpu_custom_call.1} parent=0 // pred_region
    _
  $region13: #{tpu_custom_call.1} parent=0 // pred_fallthru
    _

</llo_original>
